<compile_context>
chip_gen: v6e
topology: v6e:2x2x1
jax: 0.10.0
libtpu: 0.0.40
codegen_flags: <defaults>
</compile_context>

<pallas_src>
import jax
import jax.numpy as jnp
from jax.experimental import pallas as pl
from jax.experimental.pallas import tpu as pltpu

LN_EPS = 1e-5


def _multimlp_kernel(x_ref, w0_ref, b0_ref, w0m_ref, b0m_ref, seg_ref,
                     segt_g_ref, beta_ref, wf_ref, bf_ref, o_ref):
    # x_ref:      (TN, D_in)  f32 row tile of X
    # w0_ref:     (D_in, MH)  bf16 packed layer-1 weights
    # b0_ref:     (1, MH)     f32 packed layer-1 bias
    # w0m_ref:    (D_in, M)   f32 folded per-model mean weights
    # b0m_ref:    (1, M)      f32 folded per-model mean bias
    # seg_ref:    (MH, M)     bf16 segment indicator scaled by 1/H
    # segt_g_ref: (M, MH)     f32 segment^T with LayerNorm gamma folded in
    # beta_ref:   (1, MH)     f32 LayerNorm beta
    # wf_ref:     (MH, M)     bf16 block-diagonal final-layer weights
    # bf_ref:     (1, M)      f32 final-layer bias
    # o_ref:      (TN, M)     f32 lane-dense output
    x = x_ref[...]                                   # f32
    x_bf = x.astype(jnp.bfloat16)

    # --- Layer 1 (all M models fused): bf16 MXU, f32 accumulate ---
    h = jnp.dot(x_bf, w0_ref[...], preferred_element_type=jnp.float32) + b0_ref[...]

    # --- Per-model mean, folded onto X (tiny f32 matmul; replaces s1) ---
    mu = jnp.dot(x, w0m_ref[...], preferred_element_type=jnp.float32) + b0m_ref[...]

    # --- E[h^2] per model: 1/H pre-folded into seg; bf16 MXU, f32 accumulate ---
    hh = h * h
    e2 = jnp.dot(hh.astype(jnp.bfloat16), seg_ref[...],
                 preferred_element_type=jnp.float32)                 # (TN, M)
    var = jnp.maximum(e2 - mu * mu, 0.0)             # cancellation guard
    inv = jax.lax.rsqrt(var + LN_EPS)                # EUP slot

    # --- Broadcast per-(row,model) scale/shift back to lanes, gamma folded.
    #     Kept f32 (review correctness concern); K=M=8 so push volume is tiny.
    scale_b = jnp.dot(inv, segt_g_ref[...], preferred_element_type=jnp.float32)
    shift_b = jnp.dot(-mu * inv, segt_g_ref[...], preferred_element_type=jnp.float32)
    hn = h * scale_b + (shift_b + beta_ref[...])

    # --- ReLU (dropout p=0.0 is identity) ---
    hn = jnp.maximum(hn, 0.0)

    # --- Final block-diagonal fc for all models: bf16 MXU, f32 accumulate ---
    out = jnp.dot(hn.astype(jnp.bfloat16), wf_ref[...],
                  preferred_element_type=jnp.float32) + bf_ref[...]
    o_ref[...] = out.astype(o_ref.dtype)


def _round_up(a: int, b: int) -> int:
    return ((a + b - 1) // b) * b


@jax.jit
def multimlp_forward(X, w0, b0, g0, be0, wf, bf):
    """X: [..., D_in]  ->  [..., 1, n_models]  (model_aggregation='none')."""
    lead = X.shape[:-1]
    d_in = X.shape[-1]
    M, _, H = w0.shape
    MH = M * H

    # ---- pack / fold per-model parameters (tiny; done once per call by XLA) ----
    w0p = jnp.transpose(w0, (1, 0, 2)).reshape(d_in, MH)     # w0p[d, m*H+k] = w0[m,d,k]
    b0p = b0[:, 0, :].reshape(1, MH)
    g0p = g0[:, 0, :].reshape(1, MH)
    be0p = be0[:, 0, :].reshape(1, MH)
    eye = jnp.eye(M, dtype=jnp.float32)
    seg = jnp.repeat(eye, H, axis=0)                         # (MH, M) indicator
    inv_h = 1.0 / float(H)
    w0m = (w0p @ seg) * inv_h                                # (d_in, M) folded mean weights
    b0m = (b0p @ seg) * inv_h                                # (1, M)
    seg_s = (seg * inv_h).astype(jnp.bfloat16)               # 1/H folded, bf16 operand
    segt_g = seg.T * g0p                                     # (M, MH), gamma folded, f32
    wfb = (wf * eye[:, None, :]).reshape(MH, M).astype(jnp.bfloat16)  # block-diag, bf16
    bfp = bf[:, 0, 0].reshape(1, M)
    w0p_bf = w0p.astype(jnp.bfloat16)

    # ---- flatten rows; NO wrapper pad/astype pass over X (ragged tail is
    #      handled by Pallas partial-block masking; bf16 cast happens in-kernel)
    x2 = X.reshape(-1, d_in)
    if x2.dtype != jnp.float32:
        x2 = x2.astype(jnp.float32)
    n = x2.shape[0]

    # ---- row-tile choice: large tiles to amortize per-step overhead, but
    #      keep >= 2 grid steps for moderate N so v7x's 2nd TensorCore is used.
    n16 = _round_up(n, 16)
    if n16 <= 256:
        tn = n16
    elif n16 <= 2048:
        tn = _round_up(pl.cdiv(n16, 2), 16)
    else:
        tn = 1024
    grid = pl.cdiv(n, tn)

    def full(shape):
        # whole-array block, constant across the row grid (weights stay resident)
        return pl.BlockSpec(shape, lambda i: (0, 0))

    out = pl.pallas_call(
        _multimlp_kernel,
        out_shape=jax.ShapeDtypeStruct((n, M), jnp.float32),
        grid_spec=pltpu.PrefetchScalarGridSpec(
            num_scalar_prefetch=0,
            grid=(grid,),
            in_specs=[
                pl.BlockSpec((tn, d_in), lambda i: (i, 0)),   # X row tiles (f32)
                full((d_in, MH)),                             # packed W0 (bf16)
                full((1, MH)),                                # packed b0
                full((d_in, M)),                              # folded mean weights
                full((1, M)),                                 # folded mean bias
                full((MH, M)),                                # seg / H (bf16)
                full((M, MH)),                                # seg^T * gamma (f32)
                full((1, MH)),                                # beta
                full((MH, M)),                                # block-diag Wf (bf16)
                full((1, M)),                                 # bf
            ],
            out_specs=pl.BlockSpec((tn, M), lambda i: (i, 0)),
        ),
        compiler_params=pltpu.CompilerParams(
            dimension_semantics=("parallel",),
            vmem_limit_bytes=32 * 1024 * 1024),
    )(x2, w0p_bf, b0p, w0m, b0m, seg_s, segt_g, be0p, wfb, bfp)

    return out.reshape(*lead, 1, M)                  # [***, 1, out_dims]


def _reference(X, w0, b0, g0, be0, wf, bf):
    """Pure-JAX f32 reference of the same forward pass (per-model, like PyTorch)."""
    outs = []
    for m in range(w0.shape[0]):
        h = X @ w0[m] + b0[m, 0]
        mu = jnp.mean(h, axis=-1, keepdims=True)
        var = jnp.mean((h - mu) ** 2, axis=-1, keepdims=True)
        h = (h - mu) / jnp.sqrt(var + LN_EPS) * g0[m, 0] + be0[m, 0]
        h = jnp.maximum(h, 0.0)
        o = h @ wf[m] + bf[m, 0]                     # [..., 1]
        outs.append(o[..., None])                    # [..., 1, 1]
    return jnp.concatenate(outs, axis=-1)            # [..., 1, M]


if __name__ == "__main__":
    # Module hyperparameters
    n_layers = 2
    in_dims = 16
    hidden_dims = 32
    out_dims = 8          # model_aggregation='none' => n_models = out_dims
    n_models = out_dims

    key = jax.random.PRNGKey(0)
    kx, kw0, kb0, kwf, kbf = jax.random.split(key, 5)

    # Deterministic parameter init (stacked per model).
    w0 = jax.random.normal(kw0, (n_models, in_dims, hidden_dims), jnp.float32) * 0.1
    b0 = jax.random.normal(kb0, (n_models, 1, hidden_dims), jnp.float32) * 0.1
    g0 = jnp.ones((n_models, 1, hidden_dims), jnp.float32)    # LayerNorm gamma
    be0 = jnp.zeros((n_models, 1, hidden_dims), jnp.float32)  # LayerNorm beta
    wf = jax.random.normal(kwf, (n_models, hidden_dims, 1), jnp.float32) * 0.1
    bf = jax.random.normal(kbf, (n_models, 1, 1), jnp.float32) * 0.1

    # Input: [batch=2, seq=8, in_dims=16]
    X = jax.random.normal(kx, (2, 8, in_dims), jnp.float32)

    out = multimlp_forward(X, w0, b0, g0, be0, wf, bf)
    jax.block_until_ready(out)

    ref = _reference(X, w0, b0, g0, be0, wf, bf)
    assert out.shape == (2, 8, 1, out_dims), out.shape
    # Tolerance reflects bf16 MXU inputs on the large matmuls (LN statistics,
    # scale/shift and all accumulation stay f32); f32-only reference.
    assert jnp.allclose(out, ref, atol=5e-2, rtol=5e-2), \
        float(jnp.max(jnp.abs(out - ref)))

    print("KERNEL_OK")
</pallas_src>

<mosaic_0001>
module attributes {stable_mosaic.version = 11 : i64} {
  func.func @_multimlp_kernel(%arg0: i32, %arg1: memref<16x16xf32, #tpu.memory_space<vmem>>, %arg2: memref<16x256xbf16, #tpu.memory_space<vmem>>, %arg3: memref<1x256xf32, #tpu.memory_space<vmem>>, %arg4: memref<16x8xf32, #tpu.memory_space<vmem>>, %arg5: memref<1x8xf32, #tpu.memory_space<vmem>>, %arg6: memref<256x8xbf16, #tpu.memory_space<vmem>>, %arg7: memref<8x256xf32, #tpu.memory_space<vmem>>, %arg8: memref<1x256xf32, #tpu.memory_space<vmem>>, %arg9: memref<256x8xbf16, #tpu.memory_space<vmem>>, %arg10: memref<1x8xf32, #tpu.memory_space<vmem>>, %arg11: memref<16x8xf32, #tpu.memory_space<vmem>>) attributes {dimension_semantics = [#tpu.dimension_semantics<parallel>], iteration_bounds = array<i64: 1>, scalar_prefetch = 0 : i64, scratch_operands = 0 : i64, tpu.core_type = #tpu.core_type<tc>, window_params = [{transform_indices = @transform_0, window_bounds = array<i64: 16, 16>}, {pipeline_mode = #tpu.pipeline_mode<synchronous>, transform_indices = @transform_1, window_bounds = array<i64: 16, 256>}, {pipeline_mode = #tpu.pipeline_mode<synchronous>, transform_indices = @transform_2, window_bounds = array<i64: 1, 256>}, {pipeline_mode = #tpu.pipeline_mode<synchronous>, transform_indices = @transform_3, window_bounds = array<i64: 16, 8>}, {pipeline_mode = #tpu.pipeline_mode<synchronous>, transform_indices = @transform_4, window_bounds = array<i64: 1, 8>}, {pipeline_mode = #tpu.pipeline_mode<synchronous>, transform_indices = @transform_5, window_bounds = array<i64: 256, 8>}, {pipeline_mode = #tpu.pipeline_mode<synchronous>, transform_indices = @transform_6, window_bounds = array<i64: 8, 256>}, {pipeline_mode = #tpu.pipeline_mode<synchronous>, transform_indices = @transform_7, window_bounds = array<i64: 1, 256>}, {pipeline_mode = #tpu.pipeline_mode<synchronous>, transform_indices = @transform_8, window_bounds = array<i64: 256, 8>}, {pipeline_mode = #tpu.pipeline_mode<synchronous>, transform_indices = @transform_9, window_bounds = array<i64: 1, 8>}, {transform_indices = @transform_10, window_bounds = array<i64: 16, 8>}]} {
    %c0 = arith.constant 0 : index
    %c0_0 = arith.constant 0 : index
    %0 = vector.load %arg1[%c0, %c0_0] : memref<16x16xf32, #tpu.memory_space<vmem>>, vector<16x16xf32>
    %1 = arith.truncf %0 : vector<16x16xf32> to vector<16x16xbf16>
    %c0_1 = arith.constant 0 : index
    %c0_2 = arith.constant 0 : index
    %2 = vector.load %arg2[%c0_1, %c0_2] : memref<16x256xbf16, #tpu.memory_space<vmem>>, vector<16x256xbf16>
    %cst = arith.constant dense<0.000000e+00> : vector<16x256xf32>
    %3 = tpu.matmul %1, %2, %cst {dimension_numbers = #tpu.dot_dimension_numbers<[1], [0], [0], [1], [0, 0, 1, 1], [], []>} : vector<16x16xbf16>, vector<16x256xbf16>, vector<16x256xf32> -> vector<16x256xf32>
    %c0_3 = arith.constant 0 : index
    %c0_4 = arith.constant 0 : index
    %4 = vector.load %arg3[%c0_3, %c0_4] : memref<1x256xf32, #tpu.memory_space<vmem>>, vector<1x256xf32>
    %5 = vector.broadcast %4 : vector<1x256xf32> to vector<16x256xf32>
    %6 = arith.addf %3, %5 : vector<16x256xf32>
    %c0_5 = arith.constant 0 : index
    %c0_6 = arith.constant 0 : index
    %7 = vector.load %arg4[%c0_5, %c0_6] : memref<16x8xf32, #tpu.memory_space<vmem>>, vector<16x8xf32>
    %cst_7 = arith.constant dense<0.000000e+00> : vector<16x8xf32>
    %8 = tpu.matmul %0, %7, %cst_7 {dimension_numbers = #tpu.dot_dimension_numbers<[1], [0], [0], [1], [0, 0, 1, 1], [], []>} : vector<16x16xf32>, vector<16x8xf32>, vector<16x8xf32> -> vector<16x8xf32>
    %c0_8 = arith.constant 0 : index
    %c0_9 = arith.constant 0 : index
    %9 = vector.load %arg5[%c0_8, %c0_9] : memref<1x8xf32, #tpu.memory_space<vmem>>, vector<1x8xf32>
    %10 = vector.broadcast %9 : vector<1x8xf32> to vector<16x8xf32>
    %11 = arith.addf %8, %10 : vector<16x8xf32>
    %12 = arith.mulf %6, %6 : vector<16x256xf32>
    %13 = arith.truncf %12 : vector<16x256xf32> to vector<16x256xbf16>
    %c0_10 = arith.constant 0 : index
    %c0_11 = arith.constant 0 : index
    %14 = vector.load %arg6[%c0_10, %c0_11] : memref<256x8xbf16, #tpu.memory_space<vmem>>, vector<256x8xbf16>
    %cst_12 = arith.constant dense<0.000000e+00> : vector<16x8xf32>
    %15 = tpu.matmul %13, %14, %cst_12 {dimension_numbers = #tpu.dot_dimension_numbers<[1], [0], [0], [1], [0, 0, 1, 1], [], []>} : vector<16x256xbf16>, vector<256x8xbf16>, vector<16x8xf32> -> vector<16x8xf32>
    %16 = arith.mulf %11, %11 : vector<16x8xf32>
    %17 = arith.subf %15, %16 : vector<16x8xf32>
    %cst_13 = arith.constant 0.000000e+00 : f32
    %18 = vector.broadcast %cst_13 : f32 to vector<16x8xf32>
    %19 = arith.maximumf %17, %18 : vector<16x8xf32>
    %cst_14 = arith.constant 9.99999974E-6 : f32
    %20 = vector.broadcast %cst_14 : f32 to vector<16x8xf32>
    %21 = arith.addf %19, %20 : vector<16x8xf32>
    %22 = math.rsqrt %21 : vector<16x8xf32>
    %c0_15 = arith.constant 0 : index
    %c0_16 = arith.constant 0 : index
    %23 = vector.load %arg7[%c0_15, %c0_16] : memref<8x256xf32, #tpu.memory_space<vmem>>, vector<8x256xf32>
    %cst_17 = arith.constant dense<0.000000e+00> : vector<16x256xf32>
    %24 = tpu.matmul %22, %23, %cst_17 {dimension_numbers = #tpu.dot_dimension_numbers<[1], [0], [0], [1], [0, 0, 1, 1], [], []>} : vector<16x8xf32>, vector<8x256xf32>, vector<16x256xf32> -> vector<16x256xf32>
    %cst_18 = arith.constant 0.000000e+00 : f32
    %25 = vector.broadcast %cst_18 : f32 to vector<16x8xf32>
    %26 = arith.subf %25, %11 : vector<16x8xf32>
    %27 = arith.mulf %26, %22 : vector<16x8xf32>
    %c0_19 = arith.constant 0 : index
    %c0_20 = arith.constant 0 : index
    %28 = vector.load %arg7[%c0_19, %c0_20] : memref<8x256xf32, #tpu.memory_space<vmem>>, vector<8x256xf32>
    %cst_21 = arith.constant dense<0.000000e+00> : vector<16x256xf32>
    %29 = tpu.matmul %27, %28, %cst_21 {dimension_numbers = #tpu.dot_dimension_numbers<[1], [0], [0], [1], [0, 0, 1, 1], [], []>} : vector<16x8xf32>, vector<8x256xf32>, vector<16x256xf32> -> vector<16x256xf32>
    %30 = arith.mulf %6, %24 : vector<16x256xf32>
    %c0_22 = arith.constant 0 : index
    %c0_23 = arith.constant 0 : index
    %31 = vector.load %arg8[%c0_22, %c0_23] : memref<1x256xf32, #tpu.memory_space<vmem>>, vector<1x256xf32>
    %32 = vector.broadcast %31 : vector<1x256xf32> to vector<16x256xf32>
    %33 = arith.addf %29, %32 : vector<16x256xf32>
    %34 = arith.addf %30, %33 : vector<16x256xf32>
    %cst_24 = arith.constant 0.000000e+00 : f32
    %35 = vector.broadcast %cst_24 : f32 to vector<16x256xf32>
    %36 = arith.maximumf %34, %35 : vector<16x256xf32>
    %37 = arith.truncf %36 : vector<16x256xf32> to vector<16x256xbf16>
    %c0_25 = arith.constant 0 : index
    %c0_26 = arith.constant 0 : index
    %38 = vector.load %arg9[%c0_25, %c0_26] : memref<256x8xbf16, #tpu.memory_space<vmem>>, vector<256x8xbf16>
    %cst_27 = arith.constant dense<0.000000e+00> : vector<16x8xf32>
    %39 = tpu.matmul %37, %38, %cst_27 {dimension_numbers = #tpu.dot_dimension_numbers<[1], [0], [0], [1], [0, 0, 1, 1], [], []>} : vector<16x256xbf16>, vector<256x8xbf16>, vector<16x8xf32> -> vector<16x8xf32>
    %c0_28 = arith.constant 0 : index
    %c0_29 = arith.constant 0 : index
    %40 = vector.load %arg10[%c0_28, %c0_29] : memref<1x8xf32, #tpu.memory_space<vmem>>, vector<1x8xf32>
    %41 = vector.broadcast %40 : vector<1x8xf32> to vector<16x8xf32>
    %42 = arith.addf %39, %41 : vector<16x8xf32>
    %c0_30 = arith.constant 0 : index
    %c0_31 = arith.constant 0 : index
    %43 = vector.load %arg11[%c0_30, %c0_31] : memref<16x8xf32, #tpu.memory_space<vmem>>, vector<16x8xf32>
    tpu.vector_store %arg11[%c0_30, %c0_31], %42 {strides = array<i32>} : memref<16x8xf32, #tpu.memory_space<vmem>>, vector<16x8xf32>,
    return
  }
  func.func @transform_0(%arg0: i32) -> (i32, i32) {
    %c0_i32 = arith.constant 0 : i32
    %c0_i32_0 = arith.constant 0 : i32
    return %arg0, %c0_i32 : i32, i32
  }
  func.func @transform_1(%arg0: i32) -> (i32, i32) {
    %c0_i32 = arith.constant 0 : i32
    %c0_i32_0 = arith.constant 0 : i32
    %c0_i32_1 = arith.constant 0 : i32
    return %c0_i32, %c0_i32_0 : i32, i32
  }
  func.func @transform_2(%arg0: i32) -> (i32, i32) {
    %c0_i32 = arith.constant 0 : i32
    %c0_i32_0 = arith.constant 0 : i32
    %c0_i32_1 = arith.constant 0 : i32
    return %c0_i32, %c0_i32_0 : i32, i32
  }
  func.func @transform_3(%arg0: i32) -> (i32, i32) {
    %c0_i32 = arith.constant 0 : i32
    %c0_i32_0 = arith.constant 0 : i32
    %c0_i32_1 = arith.constant 0 : i32
    return %c0_i32, %c0_i32_0 : i32, i32
  }
  func.func @transform_4(%arg0: i32) -> (i32, i32) {
    %c0_i32 = arith.constant 0 : i32
    %c0_i32_0 = arith.constant 0 : i32
    %c0_i32_1 = arith.constant 0 : i32
    return %c0_i32, %c0_i32_0 : i32, i32
  }
  func.func @transform_5(%arg0: i32) -> (i32, i32) {
    %c0_i32 = arith.constant 0 : i32
    %c0_i32_0 = arith.constant 0 : i32
    %c0_i32_1 = arith.constant 0 : i32
    return %c0_i32, %c0_i32_0 : i32, i32
  }
  func.func @transform_6(%arg0: i32) -> (i32, i32) {
    %c0_i32 = arith.constant 0 : i32
    %c0_i32_0 = arith.constant 0 : i32
    %c0_i32_1 = arith.constant 0 : i32
    return %c0_i32, %c0_i32_0 : i32, i32
  }
  func.func @transform_7(%arg0: i32) -> (i32, i32) {
    %c0_i32 = arith.constant 0 : i32
    %c0_i32_0 = arith.constant 0 : i32
    %c0_i32_1 = arith.constant 0 : i32
    return %c0_i32, %c0_i32_0 : i32, i32
  }
  func.func @transform_8(%arg0: i32) -> (i32, i32) {
    %c0_i32 = arith.constant 0 : i32
    %c0_i32_0 = arith.constant 0 : i32
    %c0_i32_1 = arith.constant 0 : i32
    return %c0_i32, %c0_i32_0 : i32, i32
  }
  func.func @transform_9(%arg0: i32) -> (i32, i32) {
    %c0_i32 = arith.constant 0 : i32
    %c0_i32_0 = arith.constant 0 : i32
    %c0_i32_1 = arith.constant 0 : i32
    return %c0_i32, %c0_i32_0 : i32, i32
  }
  func.func @transform_10(%arg0: i32) -> (i32, i32) {
    %c0_i32 = arith.constant 0 : i32
    %c0_i32_0 = arith.constant 0 : i32
    return %arg0, %c0_i32 : i32, i32
  }
}

</mosaic_0001>

<llo_original>
// kernel: mul.22
$region0: #{mul.22}
  %s0 = inlined_call_operand.vmem [shape: f32[8,32], index: 0, kind: input, shape index: {}]
  %s1 = inlined_call_operand.vmem [shape: f32[256], index: 1, kind: output, shape index: {}]
  $region1: #{mul.22} parent=0
    #allocation0 [shape = 'u8[4096]{0}', space=vmem, size = 0x1000, scoped, tag = 'scoped mem for output reshape']
    %s2 = smov 3
    %v3 = vld [vmem:[%s0] ss:$4 sm:%s2]
    %vm4 = vcmask 261120
    %5 = vst.msk [vmem:[#allocation0] sm:$0x3] %vm4, %v3
    %s6 = scalar_lea.vmem %s0, 3
    %s7 = smov 3
    %v8 = vld [vmem:[%s6] ss:$4 sm:%s7]
    %9 = vrot.lane.b32.xlu0 %v8, 96
    %v10 = vpop.permute.xlu0 %9
    %vm11 = vcmask 1048320
    %12 = vst.msk [vmem:[#allocation0] sm:$0x3] %vm11, %v10
    %s13 = scalar_lea.vmem %s0, 2
    %s14 = smov 3
    %v15 = vld [vmem:[%s13] ss:$4 sm:%s14]
    %16 = vrot.lane.b32.xlu0 %v15, 64
    %v17 = vpop.permute.xlu0 %16
    %vm18 = vcmask 785920
    %19 = vst.msk [vmem:[#allocation0] sm:$0x3] %vm18, %v17
    %s20 = scalar_lea.vmem %s0, 1
    %s21 = smov 3
    %v22 = vld [vmem:[%s20] ss:$4 sm:%s21]
    %23 = vrot.lane.b32.xlu0 %v22, 32
    %v24 = vpop.permute.xlu0 %23
    %vm25 = vcmask 523520
    %26 = vst.msk [vmem:[#allocation0] sm:$0x3] %vm25, %v24
    %s28 = sshll.u32 1, 2
    %s29 = ssub.s32 %s28, 1
    %v31 = vld [vmem:[#allocation0] sm:%s29]
    %s32 = sshll.u32 1, 2
    %s33 = ssub.s32 %s32, 1
    %34 = vst [vmem:[%s1] sm:%s33] %v31

// kernel: squeeze.4
$region0: #{squeeze.4}
  %s0 = inlined_call_operand.vmem [shape: f32[8,32], index: 0, kind: input, shape index: {}]
  %s1 = inlined_call_operand.vmem [shape: f32[1,256], index: 1, kind: output, shape index: {}]
  $region1: #{squeeze.4} parent=0
    #allocation0 [shape = 'u8[8192]{0}', space=vmem, size = 0x2000, scoped, tag = 'scoped mem for output reshape']
    %s2 = smov 3
    %v3 = vld [vmem:[%s0] ss:$4 sm:%s2]
    %vm4 = vcmask 261120
    %5 = vst.msk [vmem:[#allocation0] ss:$8 sm:$0x3] %vm4, %v3
    %s6 = scalar_lea.vmem %s0, 3
    %s7 = smov 3
    %v8 = vld [vmem:[%s6] ss:$4 sm:%s7]
    %9 = vrot.lane.b32.xlu0 %v8, 96
    %v10 = vpop.permute.xlu0 %9
    %vm11 = vcmask 1048320
    %12 = vst.msk [vmem:[#allocation0] ss:$8 sm:$0x3] %vm11, %v10
    %s13 = scalar_lea.vmem %s0, 2
    %s14 = smov 3
    %v15 = vld [vmem:[%s13] ss:$4 sm:%s14]
    %16 = vrot.lane.b32.xlu0 %v15, 64
    %v17 = vpop.permute.xlu0 %16
    %vm18 = vcmask 785920
    %19 = vst.msk [vmem:[#allocation0] ss:$8 sm:$0x3] %vm18, %v17
    %s20 = scalar_lea.vmem %s0, 1
    %s21 = smov 3
    %v22 = vld [vmem:[%s20] ss:$4 sm:%s21]
    %23 = vrot.lane.b32.xlu0 %v22, 32
    %v24 = vpop.permute.xlu0 %23
    %vm25 = vcmask 523520
    %26 = vst.msk [vmem:[#allocation0] ss:$8 sm:$0x3] %vm25, %v24
    %s28 = sshll.u32 1, 1
    %s29 = ssub.s32 %s28, 1
    %v31 = vld [vmem:[#allocation0] sm:%s29]
    %s32 = sshll.u32 1, 1
    %s33 = ssub.s32 %s32, 1
    %34 = vst [vmem:[%s1] sm:%s33] %v31
    %s35 = scalar_lea.vmem [#allocation0], 8
    %v36 = vld [vmem:[%s35] sm:%s29]
    %s37 = sshll.u32 1, 1
    %s38 = ssub.s32 %s37, 1
    %s39 = scalar_lea.vmem %s1, 1
    %40 = vst [vmem:[%s39] sm:%s38] %v36

// kernel: multimlp_forward.1
$region0: #{multimlp_forward.1}
  #allocation0 [shape = 'u32[]', space=smem, size = 0x4, offset = 0x4, fixed_abs, tag = 'smem constant byte address 0x4 - core index']
  #allocation1 [shape = 'u32[144,128]{1,0:T(1,128)}', space=vmem, size = 0x12000, scoped, tag = 'internal scratch']
  %s0 = inlined_call_operand.vmem [shape: f32[16,16], index: 0, kind: input, shape index: {}]
  %s1 = inlined_call_operand.vmem [shape: bf16[16,256], index: 1, kind: input, shape index: {}]
  %s2 = inlined_call_operand.vmem [shape: f32[1,256], index: 2, kind: input, shape index: {}]
  %s3 = inlined_call_operand.vmem [shape: f32[16,8], index: 3, kind: input, shape index: {}]
  %s4 = inlined_call_operand.vmem [shape: f32[1,8], index: 4, kind: input, shape index: {}]
  %s5 = inlined_call_operand.vmem [shape: bf16[256,8], index: 5, kind: input, shape index: {}]
  %s6 = inlined_call_operand.vmem [shape: f32[8,256], index: 6, kind: input, shape index: {}]
  %s7 = inlined_call_operand.vmem [shape: f32[1,256], index: 7, kind: input, shape index: {}]
  %s8 = inlined_call_operand.vmem [shape: bf16[256,8], index: 8, kind: input, shape index: {}]
  %s9 = inlined_call_operand.vmem [shape: f32[1,8], index: 9, kind: input, shape index: {}]
  %s10 = inlined_call_operand.hbm [shape: f32[16,8], index: 10, kind: output, shape index: {}]
  %s11 = sld [smem:[#allocation0]]
  $region50: #{multimlp_forward.1} parent=0
    _
  %s13 = ssub.s32 1, %s11
  %s14 = scalar_select 0, %s13, %s11
  $region1: #{multimlp_forward.1} parent=0
    #allocation2 [shape = 'u8[8192]{0}', space=vmem, size = 0x2000, scoped, tag = 'output window, operand 0, single buffered']
    #allocation3 [shape = 's32[1]{0}', space=sflag, size = 0x4, scoped, tag = 'scoped memory for multimlp_forward.1']
    %15 = vsyncpa [#allocation3], 0
    // Predicated region
    $region2: #{multimlp_forward.1} parent=1 // pred_check
      _
    $region3: #{multimlp_forward.1} parent=1 // pred_check_branch
      %17 = sbr.rel (0) target = $region5
    $region4: #{multimlp_forward.1} parent=1 // pred_region
      _
    $region5: #{multimlp_forward.1} parent=1 // pred_fallthru
      _
    // Predicated region
    $region6: #{multimlp_forward.1} parent=1 // pred_check
      _
    $region7: #{multimlp_forward.1} parent=1 // pred_check_branch
      %19 = sbr.rel (0) target = $region9
    $region8: #{multimlp_forward.1} parent=1 // pred_region
      _
    $region9: #{multimlp_forward.1} parent=1 // pred_fallthru
      _
    // Predicated region
    $region10: #{multimlp_forward.1} parent=1 // pred_check
      _
    $region11: #{multimlp_forward.1} parent=1 // pred_check_branch
      %21 = sbr.rel (0) target = $region13
    $region12: #{multimlp_forward.1} parent=1 // pred_region
      _
    $region13: #{multimlp_forward.1} parent=1 // pred_fallthru
      _
    // Predicated region
    $region14: #{multimlp_forward.1} parent=1 // pred_check
      _
    $region15: #{multimlp_forward.1} parent=1 // pred_check_branch
      %23 = sbr.rel (0) target = $region17
    $region16: #{multimlp_forward.1} parent=1 // pred_region
      _
    $region17: #{multimlp_forward.1} parent=1 // pred_fallthru
      _
    // Predicated region
    $region18: #{multimlp_forward.1} parent=1 // pred_check
      _
    $region19: #{multimlp_forward.1} parent=1 // pred_check_branch
      %25 = sbr.rel (0) target = $region21
    $region20: #{multimlp_forward.1} parent=1 // pred_region
      _
    $region21: #{multimlp_forward.1} parent=1 // pred_fallthru
      _
    // Predicated region
    $region22: #{multimlp_forward.1} parent=1 // pred_check
      _
    $region23: #{multimlp_forward.1} parent=1 // pred_check_branch
      %27 = sbr.rel (0) target = $region25
    $region24: #{multimlp_forward.1} parent=1 // pred_region
      _
    $region25: #{multimlp_forward.1} parent=1 // pred_fallthru
      _
    // Predicated region
    $region26: #{multimlp_forward.1} parent=1 // pred_check
      _
    $region27: #{multimlp_forward.1} parent=1 // pred_check_branch
      %29 = sbr.rel (0) target = $region29
    $region28: #{multimlp_forward.1} parent=1 // pred_region
      _
    $region29: #{multimlp_forward.1} parent=1 // pred_fallthru
      _
    // Predicated region
    $region30: #{multimlp_forward.1} parent=1 // pred_check
      _
    $region31: #{multimlp_forward.1} parent=1 // pred_check_branch
      %31 = sbr.rel (0) target = $region33
    $region32: #{multimlp_forward.1} parent=1 // pred_region
      _
    $region33: #{multimlp_forward.1} parent=1 // pred_fallthru
      _
    // Predicated region
    $region34: #{multimlp_forward.1} parent=1 // pred_check
      _
    $region35: #{multimlp_forward.1} parent=1 // pred_check_branch
      %33 = sbr.rel (0) target = $region37
    $region36: #{multimlp_forward.1} parent=1 // pred_region
      _
    $region37: #{multimlp_forward.1} parent=1 // pred_fallthru
      _
    // Predicated region
    $region38: #{multimlp_forward.1} parent=1 // pred_check
      _
    $region39: #{multimlp_forward.1} parent=1 // pred_check_branch
      %35 = sbr.rel (0) target = $region41
    $region40: #{multimlp_forward.1} parent=1 // pred_region
      _
    $region41: #{multimlp_forward.1} parent=1 // pred_fallthru
      _
    %v37 = vld [vmem:[%s0] sm:$0xff]
    %v38 = vld [vmem:[%s0 + $0x8] sm:$0xff]
    %v39 = vpack.c.bf16 %v38, %v37
    %v40 = vld [vmem:[%s1] sm:$0xff]
    %v41 = vld [vmem:[%s1 + $0x8] sm:$0xff]
    %v42 = vld [vmem:[%s2] sm:$0x3]
    %v44 = vlaneseq
    %v45 = vshrl.u32 %v44, 7
    %v46 = vsub.s32 0, %v45
    %v47 = vrot.slane %v42, %v46
    %v48 = vlaneseq
    %v49 = vshrl.u32 %v48, 7
    %v50 = vsub.s32 1, %v49
    %v51 = vrot.slane %v42, %v50
    %v56 = vunpack.c.l.b16 %v40
    %v57 = vunpack.c.h.b16 %v40
    %v58 = vunpack.c.l.b16 %v41
    %v59 = vunpack.c.h.b16 %v41
    %v60 = vpack.c.b16 %v58, %v56
    %v61 = vpack.c.b16 %v59, %v57
    %vm64 = vcmask 130048
    %v66 = vsel %vm64, %v39, 0
    %68 = vmatprep.subr.bf16.mxu0 0
    %69 = vmatpush1.bf16.msra.mxu0 0
    %70 = vmatprep.subr.bf16.mxu0 0
    %71 = vmatpush1.bf16.msra.mxu0 0
    %72 = vmatprep.subr.bf16.mxu0 0
    %73 = vmatpush1.bf16.msra.mxu0 0
    %74 = vmatprep.subr.bf16.mxu0 0
    %75 = vmatpush1.bf16.msra.mxu0 0
    %76 = vmatprep.subr.bf16.mxu0 0
    %77 = vmatpush1.bf16.msra.mxu0 0
    %78 = vmatprep.subr.bf16.mxu0 0
    %79 = vmatpush1.bf16.msra.mxu0 0
    %80 = vmatprep.subr.bf16.mxu0 0
    %81 = vmatpush1.bf16.msra.mxu0 0
    %82 = vmatprep.subr.bf16.mxu0 %v61
    %83 = vmatpush1.bf16.msra.mxu0 %v60
    %84 = vmatprep.subr.bf16.mxu0 0
    %85 = vmatpush2.bf16.msra.mxu0 0
    %86 = vmatprep.subr.bf16.mxu0 0
    %87 = vmatpush2.bf16.msra.mxu0 0
    %88 = vmatprep.subr.bf16.mxu0 0
    %89 = vmatpush2.bf16.msra.mxu0 0
    %90 = vmatprep.subr.bf16.mxu0 0
    %91 = vmatpush2.bf16.msra.mxu0 0
    %92 = vmatprep.subr.bf16.mxu0 0
    %93 = vmatpush2.bf16.msra.mxu0 0
    %94 = vmatprep.subr.bf16.mxu0 0
    %95 = vmatpush2.bf16.msra.mxu0 0
    %96 = vmatprep.subr.bf16.mxu0 0
    %97 = vmatpush2.bf16.msra.mxu0 0
    %98 = vmatprep.subr.bf16.mxu0 0
    %99 = vmatpush2.bf16.msra.mxu0 0
    %100 = vmatprep.mubr.bf16.mxu0 0
    %101 = vmatmul.mubr.bf16.gmra.mxu0 %v66
    %v102 = vpop.f32.mrf.mxu0
    %v103 = vadd.f32 %v47, %v102
    %v104 = vpop.f32.mrf.mxu0
    %v105 = vadd.f32 %v51, %v104
    %v106 = vpop.f32.mrf.mxu0
    %v107 = vadd.f32 %v47, %v106
    %v108 = vpop.f32.mrf.mxu0
    %v109 = vadd.f32 %v51, %v108
    %110 = vdwg.mxu0
    %v111 = vld [vmem:[%s3] sm:$0xff]
    %v112 = vld [vmem:[%s3 + $0x8] sm:$0xff]
    %v113 = vld [vmem:[%s4] sm:$0x1]
    %v115 = vlaneseq
    %v116 = vshrl.u32 %v115, 7
    %v117 = vsub.s32 0, %v116
    %v118 = vrot.slane %v113, %v117
    %v121 = vsel %vm64, %v37, 0
    %v124 = vsel %vm64, %v38, 0
    %126 = vmatprep.subr.mxu0 0.0
    %127 = vmatpush1.msra.mxu0 0.0
    %128 = vmatprep.subr.mxu0 0.0
    %129 = vmatpush1.msra.mxu0 0.0
    %130 = vmatprep.subr.mxu0 0.0
    %131 = vmatpush1.msra.mxu0 0.0
    %132 = vmatprep.subr.mxu0 0.0
    %133 = vmatpush1.msra.mxu0 0.0
    %134 = vmatprep.subr.mxu0 0.0
    %135 = vmatpush1.msra.mxu0 0.0
    %136 = vmatprep.subr.mxu0 0.0
    %137 = vmatpush1.msra.mxu0 0.0
    %138 = vmatprep.subr.mxu0 0.0
    %139 = vmatpush1.msra.mxu0 0.0
    %140 = vmatprep.subr.mxu0 0.0
    %141 = vmatpush1.msra.mxu0 0.0
    %142 = vmatprep.subr.mxu0 0.0
    %143 = vmatpush1.msra.mxu0 0.0
    %144 = vmatprep.subr.mxu0 0.0
    %145 = vmatpush1.msra.mxu0 0.0
    %146 = vmatprep.subr.mxu0 0.0
    %147 = vmatpush1.msra.mxu0 0.0
    %148 = vmatprep.subr.mxu0 0.0
    %149 = vmatpush1.msra.mxu0 0.0
    %150 = vmatprep.subr.mxu0 0.0
    %151 = vmatpush1.msra.mxu0 0.0
    %152 = vmatprep.subr.mxu0 0.0
    %153 = vmatpush1.msra.mxu0 0.0
    %154 = vmatprep.subr.mxu0 0.0
    %155 = vmatpush1.msra.mxu0 %v112
    %156 = vmatprep.subr.mxu0 0.0
    %157 = vmatpush1.msra.mxu0 %v111
    %158 = vmatprep.subr.mxu0 0.0
    %159 = vmatpush2.msra.mxu0 0.0
    %160 = vmatprep.subr.mxu0 0.0
    %161 = vmatpush2.msra.mxu0 0.0
    %162 = vmatprep.subr.mxu0 0.0
    %163 = vmatpush2.msra.mxu0 0.0
    %164 = vmatprep.subr.mxu0 0.0
    %165 = vmatpush2.msra.mxu0 0.0
    %166 = vmatprep.subr.mxu0 0.0
    %167 = vmatpush2.msra.mxu0 0.0
    %168 = vmatprep.subr.mxu0 0.0
    %169 = vmatpush2.msra.mxu0 0.0
    %170 = vmatprep.subr.mxu0 0.0
    %171 = vmatpush2.msra.mxu0 0.0
    %172 = vmatprep.subr.mxu0 0.0
    %173 = vmatpush2.msra.mxu0 0.0
    %174 = vmatprep.subr.mxu0 0.0
    %175 = vmatpush2.msra.mxu0 0.0
    %176 = vmatprep.subr.mxu0 0.0
    %177 = vmatpush2.msra.mxu0 0.0
    %178 = vmatprep.subr.mxu0 0.0
    %179 = vmatpush2.msra.mxu0 0.0
    %180 = vmatprep.subr.mxu0 0.0
    %181 = vmatpush2.msra.mxu0 0.0
    %182 = vmatprep.subr.mxu0 0.0
    %183 = vmatpush2.msra.mxu0 0.0
    %184 = vmatprep.subr.mxu0 0.0
    %185 = vmatpush2.msra.mxu0 0.0
    %186 = vmatprep.subr.mxu0 0.0
    %187 = vmatpush2.msra.mxu0 0.0
    %188 = vmatprep.subr.mxu0 0.0
    %189 = vmatpush2.msra.mxu0 0.0
    %190 = vmatprep.mubr.f32.mxu0 0.0
    %191 = vmatmul.mubr.f32.gmra.mxu0 %v121
    %v192 = vpop.f32.mrf.mxu0
    %v193 = vadd.f32 %v118, %v192
    %v194 = vpop.f32.mrf.mxu0
    %195 = vmatprep.mubr.f32.mxu0 0.0
    %196 = vmatmul.mubr.f32.gmra.mxu0 %v124
    %v197 = vpop.f32.mrf.mxu0
    %v198 = vadd.f32 %v118, %v197
    %v199 = vpop.f32.mrf.mxu0
    %200 = vdwg.mxu0
    %v201 = vmul.f32 %v103, %v103
    %v202 = vmul.f32 %v105, %v105
    %v203 = vmul.f32 %v107, %v107
    %v204 = vmul.f32 %v109, %v109
    %v205 = vpack.c.bf16 %v203, %v201
    %v206 = vpack.c.bf16 %v204, %v202
    %v207 = vld [vmem:[%s5] sm:$0xf]
    %v208 = vld [vmem:[%s5 + $0x4] sm:$0xf]
    %v209 = vld [vmem:[%s5 + $0x8] sm:$0xf]
    %v210 = vld [vmem:[%s5 + $0xc] sm:$0xf]
    %v211 = vld [vmem:[%s5 + $0x10] sm:$0xf]
    %v212 = vld [vmem:[%s5 + $0x14] sm:$0xf]
    %v213 = vld [vmem:[%s5 + $0x18] sm:$0xf]
    %v214 = vld [vmem:[%s5 + $0x1c] sm:$0xf]
    %v215 = vld [vmem:[%s5 + $0x20] sm:$0xf]
    %v216 = vld [vmem:[%s5 + $0x24] sm:$0xf]
    %v217 = vld [vmem:[%s5 + $0x28] sm:$0xf]
    %v218 = vld [vmem:[%s5 + $0x2c] sm:$0xf]
    %v219 = vld [vmem:[%s5 + $0x30] sm:$0xf]
    %v220 = vld [vmem:[%s5 + $0x34] sm:$0xf]
    %v221 = vld [vmem:[%s5 + $0x38] sm:$0xf]
    %v222 = vld [vmem:[%s5 + $0x3c] sm:$0xf]
    %v223 = vld [vmem:[%s5 + $0x40] sm:$0xf]
    %v224 = vld [vmem:[%s5 + $0x44] sm:$0xf]
    %v225 = vld [vmem:[%s5 + $0x48] sm:$0xf]
    %v226 = vld [vmem:[%s5 + $0x4c] sm:$0xf]
    %v227 = vld [vmem:[%s5 + $0x50] sm:$0xf]
    %v228 = vld [vmem:[%s5 + $0x54] sm:$0xf]
    %v229 = vld [vmem:[%s5 + $0x58] sm:$0xf]
    %v230 = vld [vmem:[%s5 + $0x5c] sm:$0xf]
    %v231 = vld [vmem:[%s5 + $0x60] sm:$0xf]
    %v232 = vld [vmem:[%s5 + $0x64] sm:$0xf]
    %v233 = vld [vmem:[%s5 + $0x68] sm:$0xf]
    %v234 = vld [vmem:[%s5 + $0x6c] sm:$0xf]
    %v235 = vld [vmem:[%s5 + $0x70] sm:$0xf]
    %v236 = vld [vmem:[%s5 + $0x74] sm:$0xf]
    %v237 = vld [vmem:[%s5 + $0x78] sm:$0xf]
    %v238 = vld [vmem:[%s5 + $0x7c] sm:$0xf]
    %v271 = vunpack.c.l.b16 %v207
    %v272 = vunpack.c.l.b16 %v208
    %v273 = vunpack.c.l.b16 %v209
    %v274 = vunpack.c.l.b16 %v210
    %v275 = vunpack.c.l.b16 %v211
    %v276 = vunpack.c.l.b16 %v212
    %v277 = vunpack.c.l.b16 %v213
    %v278 = vunpack.c.l.b16 %v214
    %v279 = vunpack.c.l.b16 %v215
    %v280 = vunpack.c.l.b16 %v216
    %v281 = vunpack.c.l.b16 %v217
    %v282 = vunpack.c.l.b16 %v218
    %v283 = vunpack.c.l.b16 %v219
    %v284 = vunpack.c.l.b16 %v220
    %v285 = vunpack.c.l.b16 %v221
    %v286 = vunpack.c.l.b16 %v222
    %v287 = vunpack.c.l.b16 %v223
    %v288 = vunpack.c.l.b16 %v224
    %v289 = vunpack.c.l.b16 %v225
    %v290 = vunpack.c.l.b16 %v226
    %v291 = vunpack.c.l.b16 %v227
    %v292 = vunpack.c.l.b16 %v228
    %v293 = vunpack.c.l.b16 %v229
    %v294 = vunpack.c.l.b16 %v230
    %v295 = vunpack.c.l.b16 %v231
    %v296 = vunpack.c.l.b16 %v232
    %v297 = vunpack.c.l.b16 %v233
    %v298 = vunpack.c.l.b16 %v234
    %v299 = vunpack.c.l.b16 %v235
    %v300 = vunpack.c.l.b16 %v236
    %v301 = vunpack.c.l.b16 %v237
    %v302 = vunpack.c.l.b16 %v238
    %v303 = vpack.c.b16 %v272, %v271
    %v304 = vpack.c.b16 %v274, %v273
    %v305 = vpack.c.b16 %v276, %v275
    %v306 = vpack.c.b16 %v278, %v277
    %v307 = vpack.c.b16 %v280, %v279
    %v308 = vpack.c.b16 %v282, %v281
    %v309 = vpack.c.b16 %v284, %v283
    %v310 = vpack.c.b16 %v286, %v285
    %v311 = vpack.c.b16 %v288, %v287
    %v312 = vpack.c.b16 %v290, %v289
    %v313 = vpack.c.b16 %v292, %v291
    %v314 = vpack.c.b16 %v294, %v293
    %v315 = vpack.c.b16 %v296, %v295
    %v316 = vpack.c.b16 %v298, %v297
    %v317 = vpack.c.b16 %v300, %v299
    %v318 = vpack.c.b16 %v302, %v301
    %335 = vmatprep.subr.bf16.mxu0 0
    %336 = vmatpush1.bf16.msra.mxu0 %v310
    %337 = vmatprep.subr.bf16.mxu0 0
    %338 = vmatpush1.bf16.msra.mxu0 %v309
    %339 = vmatprep.subr.bf16.mxu0 0
    %340 = vmatpush1.bf16.msra.mxu0 %v308
    %341 = vmatprep.subr.bf16.mxu0 0
    %342 = vmatpush1.bf16.msra.mxu0 %v307
    %343 = vmatprep.subr.bf16.mxu0 0
    %344 = vmatpush1.bf16.msra.mxu0 %v306
    %345 = vmatprep.subr.bf16.mxu0 0
    %346 = vmatpush1.bf16.msra.mxu0 %v305
    %347 = vmatprep.subr.bf16.mxu0 0
    %348 = vmatpush1.bf16.msra.mxu0 %v304
    %349 = vmatprep.subr.bf16.mxu0 0
    %350 = vmatpush1.bf16.msra.mxu0 %v303
    %351 = vmatprep.subr.bf16.mxu0 0
    %352 = vmatpush2.bf16.msra.mxu0 %v318
    %353 = vmatprep.subr.bf16.mxu0 0
    %354 = vmatpush2.bf16.msra.mxu0 %v317
    %355 = vmatprep.subr.bf16.mxu0 0
    %356 = vmatpush2.bf16.msra.mxu0 %v316
    %357 = vmatprep.subr.bf16.mxu0 0
    %358 = vmatpush2.bf16.msra.mxu0 %v315
    %359 = vmatprep.subr.bf16.mxu0 0
    %360 = vmatpush2.bf16.msra.mxu0 %v314
    %361 = vmatprep.subr.bf16.mxu0 0
    %362 = vmatpush2.bf16.msra.mxu0 %v313
    %363 = vmatprep.subr.bf16.mxu0 0
    %364 = vmatpush2.bf16.msra.mxu0 %v312
    %365 = vmatprep.subr.bf16.mxu0 0
    %366 = vmatpush2.bf16.msra.mxu0 %v311
    %367 = vmatprep.mubr.bf16.mxu0 %v206
    %368 = vmatmul.mubr.bf16.gmra.mxu0 %v205
    %v369 = vpop.f32.mrf.mxu0
    %v370 = vadd.f32 0.0, %v369
    %v371 = vpop.f32.mrf.mxu0
    %v372 = vpop.f32.mrf.mxu0
    %v373 = vadd.f32 0.0, %v372
    %v374 = vpop.f32.mrf.mxu0
    %375 = vdwg.mxu0
    %v376 = vmul.f32 %v193, %v193
    %v377 = vmul.f32 %v198, %v198
    %v378 = vsub.f32 %v370, %v376
    %v379 = vsub.f32 %v373, %v377
    %v380 = vmax.f32 %v378, 0.0
    %v381 = vmax.f32 %v379, 0.0
    %v382 = vadd.f32 %v380, 1e-05
    %v383 = vadd.f32 %v381, 1e-05
    %v384 = vrsqrt.pop %v382
    %v385 = vrsqrt.pop %v383
    %v386 = vld [vmem:[%s6] sm:$0xff]
    %v387 = vld [vmem:[%s6 + $0x8] sm:$0xff]
    %vm388 = vcmask 64512
    %v390 = vsel %vm388, %v384, 0
    %v393 = vsel %vm388, %v385, 0
    %395 = vmatprep.subr.mxu0 0.0
    %396 = vmatpush1.msra.mxu0 0.0
    %397 = vmatprep.subr.mxu0 0.0
    %398 = vmatpush1.msra.mxu0 0.0
    %399 = vmatprep.subr.mxu0 0.0
    %400 = vmatpush1.msra.mxu0 0.0
    %401 = vmatprep.subr.mxu0 0.0
    %402 = vmatpush1.msra.mxu0 0.0
    %403 = vmatprep.subr.mxu0 0.0
    %404 = vmatpush1.msra.mxu0 0.0
    %405 = vmatprep.subr.mxu0 0.0
    %406 = vmatpush1.msra.mxu0 0.0
    %407 = vmatprep.subr.mxu0 0.0
    %408 = vmatpush1.msra.mxu0 0.0
    %409 = vmatprep.subr.mxu0 0.0
    %410 = vmatpush1.msra.mxu0 0.0
    %411 = vmatprep.subr.mxu0 0.0
    %412 = vmatpush1.msra.mxu0 0.0
    %413 = vmatprep.subr.mxu0 0.0
    %414 = vmatpush1.msra.mxu0 0.0
    %415 = vmatprep.subr.mxu0 0.0
    %416 = vmatpush1.msra.mxu0 0.0
    %417 = vmatprep.subr.mxu0 0.0
    %418 = vmatpush1.msra.mxu0 0.0
    %419 = vmatprep.subr.mxu0 0.0
    %420 = vmatpush1.msra.mxu0 0.0
    %421 = vmatprep.subr.mxu0 0.0
    %422 = vmatpush1.msra.mxu0 0.0
    %423 = vmatprep.subr.mxu0 0.0
    %424 = vmatpush1.msra.mxu0 0.0
    %425 = vmatprep.subr.mxu0 %v387
    %426 = vmatpush1.msra.mxu0 %v386
    %427 = vmatprep.subr.mxu0 0.0
    %428 = vmatpush2.msra.mxu0 0.0
    %429 = vmatprep.subr.mxu0 0.0
    %430 = vmatpush2.msra.mxu0 0.0
    %431 = vmatprep.subr.mxu0 0.0
    %432 = vmatpush2.msra.mxu0 0.0
    %433 = vmatprep.subr.mxu0 0.0
    %434 = vmatpush2.msra.mxu0 0.0
    %435 = vmatprep.subr.mxu0 0.0
    %436 = vmatpush2.msra.mxu0 0.0
    %437 = vmatprep.subr.mxu0 0.0
    %438 = vmatpush2.msra.mxu0 0.0
    %439 = vmatprep.subr.mxu0 0.0
    %440 = vmatpush2.msra.mxu0 0.0
    %441 = vmatprep.subr.mxu0 0.0
    %442 = vmatpush2.msra.mxu0 0.0
    %443 = vmatprep.subr.mxu0 0.0
    %444 = vmatpush2.msra.mxu0 0.0
    %445 = vmatprep.subr.mxu0 0.0
    %446 = vmatpush2.msra.mxu0 0.0
    %447 = vmatprep.subr.mxu0 0.0
    %448 = vmatpush2.msra.mxu0 0.0
    %449 = vmatprep.subr.mxu0 0.0
    %450 = vmatpush2.msra.mxu0 0.0
    %451 = vmatprep.subr.mxu0 0.0
    %452 = vmatpush2.msra.mxu0 0.0
    %453 = vmatprep.subr.mxu0 0.0
    %454 = vmatpush2.msra.mxu0 0.0
    %455 = vmatprep.subr.mxu0 0.0
    %456 = vmatpush2.msra.mxu0 0.0
    %457 = vmatprep.subr.mxu0 0.0
    %458 = vmatpush2.msra.mxu0 0.0
    %459 = vmatprep.mubr.f32.mxu0 0.0
    %460 = vmatmul.mubr.f32.gmra.mxu0 %v390
    %v461 = vpop.f32.mrf.mxu0
    %v462 = vadd.f32 0.0, %v461
    %v463 = vpop.f32.mrf.mxu0
    %v464 = vadd.f32 0.0, %v463
    %465 = vmatprep.mubr.f32.mxu0 0.0
    %466 = vmatmul.mubr.f32.gmra.mxu0 %v393
    %v467 = vpop.f32.mrf.mxu0
    %v468 = vadd.f32 0.0, %v467
    %v469 = vpop.f32.mrf.mxu0
    %v470 = vadd.f32 0.0, %v469
    %471 = vdwg.mxu0
    %v472 = vsub.f32 0.0, %v193
    %v473 = vsub.f32 0.0, %v198
    %v474 = vmul.f32 %v472, %v384
    %v475 = vmul.f32 %v473, %v385
    %v476 = vmul.f32 %v103, %v462
    %v477 = vmul.f32 %v105, %v464
    %v478 = vmul.f32 %v107, %v468
    %v479 = vmul.f32 %v109, %v470
    %v480 = vld [vmem:[%s7] sm:$0x3]
    %v482 = vlaneseq
    %v483 = vshrl.u32 %v482, 7
    %v484 = vsub.s32 0, %v483
    %v485 = vrot.slane %v480, %v484
    %v486 = vlaneseq
    %v487 = vshrl.u32 %v486, 7
    %v488 = vsub.s32 1, %v487
    %v489 = vrot.slane %v480, %v488
    %v493 = vsel %vm388, %v474, 0
    %v496 = vsel %vm388, %v475, 0
    %498 = vmatprep.subr.mxu0 0.0
    %499 = vmatpush1.msra.mxu0 0.0
    %500 = vmatprep.subr.mxu0 0.0
    %501 = vmatpush1.msra.mxu0 0.0
    %502 = vmatprep.subr.mxu0 0.0
    %503 = vmatpush1.msra.mxu0 0.0
    %504 = vmatprep.subr.mxu0 0.0
    %505 = vmatpush1.msra.mxu0 0.0
    %506 = vmatprep.subr.mxu0 0.0
    %507 = vmatpush1.msra.mxu0 0.0
    %508 = vmatprep.subr.mxu0 0.0
    %509 = vmatpush1.msra.mxu0 0.0
    %510 = vmatprep.subr.mxu0 0.0
    %511 = vmatpush1.msra.mxu0 0.0
    %512 = vmatprep.subr.mxu0 0.0
    %513 = vmatpush1.msra.mxu0 0.0
    %514 = vmatprep.subr.mxu0 0.0
    %515 = vmatpush1.msra.mxu0 0.0
    %516 = vmatprep.subr.mxu0 0.0
    %517 = vmatpush1.msra.mxu0 0.0
    %518 = vmatprep.subr.mxu0 0.0
    %519 = vmatpush1.msra.mxu0 0.0
    %520 = vmatprep.subr.mxu0 0.0
    %521 = vmatpush1.msra.mxu0 0.0
    %522 = vmatprep.subr.mxu0 0.0
    %523 = vmatpush1.msra.mxu0 0.0
    %524 = vmatprep.subr.mxu0 0.0
    %525 = vmatpush1.msra.mxu0 0.0
    %526 = vmatprep.subr.mxu0 0.0
    %527 = vmatpush1.msra.mxu0 0.0
    %528 = vmatprep.subr.mxu0 %v387
    %529 = vmatpush1.msra.mxu0 %v386
    %530 = vmatprep.subr.mxu0 0.0
    %531 = vmatpush2.msra.mxu0 0.0
    %532 = vmatprep.subr.mxu0 0.0
    %533 = vmatpush2.msra.mxu0 0.0
    %534 = vmatprep.subr.mxu0 0.0
    %535 = vmatpush2.msra.mxu0 0.0
    %536 = vmatprep.subr.mxu0 0.0
    %537 = vmatpush2.msra.mxu0 0.0
    %538 = vmatprep.subr.mxu0 0.0
    %539 = vmatpush2.msra.mxu0 0.0
    %540 = vmatprep.subr.mxu0 0.0
    %541 = vmatpush2.msra.mxu0 0.0
    %542 = vmatprep.subr.mxu0 0.0
    %543 = vmatpush2.msra.mxu0 0.0
    %544 = vmatprep.subr.mxu0 0.0
    %545 = vmatpush2.msra.mxu0 0.0
    %546 = vmatprep.subr.mxu0 0.0
    %547 = vmatpush2.msra.mxu0 0.0
    %548 = vmatprep.subr.mxu0 0.0
    %549 = vmatpush2.msra.mxu0 0.0
    %550 = vmatprep.subr.mxu0 0.0
    %551 = vmatpush2.msra.mxu0 0.0
    %552 = vmatprep.subr.mxu0 0.0
    %553 = vmatpush2.msra.mxu0 0.0
    %554 = vmatprep.subr.mxu0 0.0
    %555 = vmatpush2.msra.mxu0 0.0
    %556 = vmatprep.subr.mxu0 0.0
    %557 = vmatpush2.msra.mxu0 0.0
    %558 = vmatprep.subr.mxu0 0.0
    %559 = vmatpush2.msra.mxu0 0.0
    %560 = vmatprep.subr.mxu0 0.0
    %561 = vmatpush2.msra.mxu0 0.0
    %562 = vmatprep.mubr.f32.mxu0 0.0
    %563 = vmatmul.mubr.f32.gmra.mxu0 %v493
    %v564 = vpop.f32.mrf.mxu0
    %v565 = vadd.f32 %v485, %v564
    %v566 = vpop.f32.mrf.mxu0
    %v567 = vadd.f32 %v489, %v566
    %568 = vmatprep.mubr.f32.mxu0 0.0
    %569 = vmatmul.mubr.f32.gmra.mxu0 %v496
    %v570 = vpop.f32.mrf.mxu0
    %v571 = vadd.f32 %v485, %v570
    %v572 = vpop.f32.mrf.mxu0
    %v573 = vadd.f32 %v489, %v572
    %574 = vdwg.mxu0
    %v575 = vadd.f32 %v476, %v565
    %v576 = vadd.f32 %v477, %v567
    %v577 = vadd.f32 %v478, %v571
    %v578 = vadd.f32 %v479, %v573
    %v579 = vmax.f32 %v575, 0.0
    %v580 = vmax.f32 %v576, 0.0
    %v581 = vmax.f32 %v577, 0.0
    %v582 = vmax.f32 %v578, 0.0
    %v583 = vpack.c.bf16 %v581, %v579
    %v584 = vpack.c.bf16 %v582, %v580
    %v585 = vld [vmem:[%s8] sm:$0xf]
    %v586 = vld [vmem:[%s8 + $0x4] sm:$0xf]
    %v587 = vld [vmem:[%s8 + $0x8] sm:$0xf]
    %v588 = vld [vmem:[%s8 + $0xc] sm:$0xf]
    %v589 = vld [vmem:[%s8 + $0x10] sm:$0xf]
    %v590 = vld [vmem:[%s8 + $0x14] sm:$0xf]
    %v591 = vld [vmem:[%s8 + $0x18] sm:$0xf]
    %v592 = vld [vmem:[%s8 + $0x1c] sm:$0xf]
    %v593 = vld [vmem:[%s8 + $0x20] sm:$0xf]
    %v594 = vld [vmem:[%s8 + $0x24] sm:$0xf]
    %v595 = vld [vmem:[%s8 + $0x28] sm:$0xf]
    %v596 = vld [vmem:[%s8 + $0x2c] sm:$0xf]
    %v597 = vld [vmem:[%s8 + $0x30] sm:$0xf]
    %v598 = vld [vmem:[%s8 + $0x34] sm:$0xf]
    %v599 = vld [vmem:[%s8 + $0x38] sm:$0xf]
    %v600 = vld [vmem:[%s8 + $0x3c] sm:$0xf]
    %v601 = vld [vmem:[%s8 + $0x40] sm:$0xf]
    %v602 = vld [vmem:[%s8 + $0x44] sm:$0xf]
    %v603 = vld [vmem:[%s8 + $0x48] sm:$0xf]
    %v604 = vld [vmem:[%s8 + $0x4c] sm:$0xf]
    %v605 = vld [vmem:[%s8 + $0x50] sm:$0xf]
    %v606 = vld [vmem:[%s8 + $0x54] sm:$0xf]
    %v607 = vld [vmem:[%s8 + $0x58] sm:$0xf]
    %v608 = vld [vmem:[%s8 + $0x5c] sm:$0xf]
    %v609 = vld [vmem:[%s8 + $0x60] sm:$0xf]
    %v610 = vld [vmem:[%s8 + $0x64] sm:$0xf]
    %v611 = vld [vmem:[%s8 + $0x68] sm:$0xf]
    %v612 = vld [vmem:[%s8 + $0x6c] sm:$0xf]
    %v613 = vld [vmem:[%s8 + $0x70] sm:$0xf]
    %v614 = vld [vmem:[%s8 + $0x74] sm:$0xf]
    %v615 = vld [vmem:[%s8 + $0x78] sm:$0xf]
    %v616 = vld [vmem:[%s8 + $0x7c] sm:$0xf]
    %v617 = vld [vmem:[%s9] sm:$0x1]
    %v619 = vlaneseq
    %v620 = vshrl.u32 %v619, 7
    %v621 = vsub.s32 0, %v620
    %v622 = vrot.slane %v617, %v621
    %v656 = vunpack.c.l.b16 %v585
    %v657 = vunpack.c.l.b16 %v586
    %v658 = vunpack.c.l.b16 %v587
    %v659 = vunpack.c.l.b16 %v588
    %v660 = vunpack.c.l.b16 %v589
    %v661 = vunpack.c.l.b16 %v590
    %v662 = vunpack.c.l.b16 %v591
    %v663 = vunpack.c.l.b16 %v592
    %v664 = vunpack.c.l.b16 %v593
    %v665 = vunpack.c.l.b16 %v594
    %v666 = vunpack.c.l.b16 %v595
    %v667 = vunpack.c.l.b16 %v596
    %v668 = vunpack.c.l.b16 %v597
    %v669 = vunpack.c.l.b16 %v598
    %v670 = vunpack.c.l.b16 %v599
    %v671 = vunpack.c.l.b16 %v600
    %v672 = vunpack.c.l.b16 %v601
    %v673 = vunpack.c.l.b16 %v602
    %v674 = vunpack.c.l.b16 %v603
    %v675 = vunpack.c.l.b16 %v604
    %v676 = vunpack.c.l.b16 %v605
    %v677 = vunpack.c.l.b16 %v606
    %v678 = vunpack.c.l.b16 %v607
    %v679 = vunpack.c.l.b16 %v608
    %v680 = vunpack.c.l.b16 %v609
    %v681 = vunpack.c.l.b16 %v610
    %v682 = vunpack.c.l.b16 %v611
    %v683 = vunpack.c.l.b16 %v612
    %v684 = vunpack.c.l.b16 %v613
    %v685 = vunpack.c.l.b16 %v614
    %v686 = vunpack.c.l.b16 %v615
    %v687 = vunpack.c.l.b16 %v616
    %v688 = vpack.c.b16 %v657, %v656
    %v689 = vpack.c.b16 %v659, %v658
    %v690 = vpack.c.b16 %v661, %v660
    %v691 = vpack.c.b16 %v663, %v662
    %v692 = vpack.c.b16 %v665, %v664
    %v693 = vpack.c.b16 %v667, %v666
    %v694 = vpack.c.b16 %v669, %v668
    %v695 = vpack.c.b16 %v671, %v670
    %v696 = vpack.c.b16 %v673, %v672
    %v697 = vpack.c.b16 %v675, %v674
    %v698 = vpack.c.b16 %v677, %v676
    %v699 = vpack.c.b16 %v679, %v678
    %v700 = vpack.c.b16 %v681, %v680
    %v701 = vpack.c.b16 %v683, %v682
    %v702 = vpack.c.b16 %v685, %v684
    %v703 = vpack.c.b16 %v687, %v686
    %720 = vmatprep.subr.bf16.mxu0 0
    %721 = vmatpush1.bf16.msra.mxu0 %v695
    %722 = vmatprep.subr.bf16.mxu0 0
    %723 = vmatpush1.bf16.msra.mxu0 %v694
    %724 = vmatprep.subr.bf16.mxu0 0
    %725 = vmatpush1.bf16.msra.mxu0 %v693
    %726 = vmatprep.subr.bf16.mxu0 0
    %727 = vmatpush1.bf16.msra.mxu0 %v692
    %728 = vmatprep.subr.bf16.mxu0 0
    %729 = vmatpush1.bf16.msra.mxu0 %v691
    %730 = vmatprep.subr.bf16.mxu0 0
    %731 = vmatpush1.bf16.msra.mxu0 %v690
    %732 = vmatprep.subr.bf16.mxu0 0
    %733 = vmatpush1.bf16.msra.mxu0 %v689
    %734 = vmatprep.subr.bf16.mxu0 0
    %735 = vmatpush1.bf16.msra.mxu0 %v688
    %736 = vmatprep.subr.bf16.mxu0 0
    %737 = vmatpush2.bf16.msra.mxu0 %v703
    %738 = vmatprep.subr.bf16.mxu0 0
    %739 = vmatpush2.bf16.msra.mxu0 %v702
    %740 = vmatprep.subr.bf16.mxu0 0
    %741 = vmatpush2.bf16.msra.mxu0 %v701
    %742 = vmatprep.subr.bf16.mxu0 0
    %743 = vmatpush2.bf16.msra.mxu0 %v700
    %744 = vmatprep.subr.bf16.mxu0 0
    %745 = vmatpush2.bf16.msra.mxu0 %v699
    %746 = vmatprep.subr.bf16.mxu0 0
    %747 = vmatpush2.bf16.msra.mxu0 %v698
    %748 = vmatprep.subr.bf16.mxu0 0
    %749 = vmatpush2.bf16.msra.mxu0 %v697
    %750 = vmatprep.subr.bf16.mxu0 0
    %751 = vmatpush2.bf16.msra.mxu0 %v696
    %752 = vmatprep.mubr.bf16.mxu0 %v584
    %753 = vmatmul.mubr.bf16.gmra.mxu0 %v583
    %v754 = vpop.f32.mrf.mxu0
    %v755 = vadd.f32 %v622, %v754
    %v756 = vpop.f32.mrf.mxu0
    %v757 = vpop.f32.mrf.mxu0
    %v758 = vadd.f32 %v622, %v757
    %v759 = vpop.f32.mrf.mxu0
    %760 = vdwg.mxu0
    %761 = vst.msk [vmem:[#allocation2] sm:$0xff] %vm388, %v755
    %762 = vst.msk [vmem:[#allocation2 + $0x8] sm:$0xff] %vm388, %v758
    // Predicated region
    $region42: #{multimlp_forward.1} parent=1 // pred_check
      _
    $region43: #{multimlp_forward.1} parent=1 // pred_check_branch
      %764 = sbr.rel (0) target = $region45
    $region44: #{multimlp_forward.1} parent=1 // pred_region
      %s766 = ssub.s32 256, 256
      %767 = vsyncadd [#allocation3], %s766
      %s768 = sshll.u32 [#allocation2], 4
      %s769 = int_to_ptr.vmem [resolvable:$true] %s768
      %774 = dma.vmem_to_hbm [thread:$0]  %s769, 256, %s10, [#allocation3], 128, 128, 8
    $region45: #{multimlp_forward.1} parent=1 // pred_fallthru
      _
    // Predicated region
    $region46: #{multimlp_forward.1} parent=1 // pred_check
      _
    $region47: #{multimlp_forward.1} parent=1 // pred_check_branch
      %776 = sbr.rel (0) target = $region49
    $region48: #{multimlp_forward.1} parent=1 // pred_region
      %777 = dma.done [#allocation3], 256
    $region49: #{multimlp_forward.1} parent=1 // pred_fallthru
      _
    %778 = vsyncpa [#allocation3], 1

</llo_original>
